<compile_context>
chip_gen: v5e
topology: v5e:2x2
jax: 0.10.0
libtpu: 0.0.40
codegen_flags: <defaults>
</compile_context>

<pallas_src>
import math

import jax
import jax.numpy as jnp
from jax.experimental import pallas as pl
from jax.experimental.pallas import tpu as pltpu


_MIN_LANES = 128                 # hardware lane width
_MAX_LANES = 1024                # widest lane-dense last dim we try
_SMALL_ELEMS_THRESHOLD = 1 << 16  # below ~64K elems, XLA's fused add wins


def _sublane_multiple(dtype) -> int:
    """Sublane packing granularity for block_rows rounding."""
    itemsize = jnp.dtype(dtype).itemsize
    if itemsize >= 4:
        return 8
    if itemsize == 2:
        return 16
    return 32


def _chip_generation() -> int:
    """Best-effort TPU generation (5/6/7); 0 if unknown."""
    try:
        kind = jax.devices()[0].device_kind.lower()
    except Exception:  # no devices / non-TPU backend
        return 0
    for gen in (7, 6, 5):
        if f"v{gen}" in kind:
            return gen
    return 0


def _tile_budget(dtype):
    """Per-buffer target bytes and optional vmem_limit_bytes, per chip gen."""
    del dtype  # budget is in bytes; dtype only affects row rounding
    gen = _chip_generation()
    if gen >= 7:
        # v7x: ~3.2 TB/s HBM makes the ~0.35us per-grid-step overhead ~15% at
        # 2 MiB tiles; 8 MiB tiles amortize it to <5%.  3 operands x 2 pipeline
        # buffers x 8 MiB = 48 MiB, which needs the scoped-VMEM limit raised
        # above the 32 MiB default (64 MiB physical per TC -> 56 MiB leaves headroom).
        return 8 << 20, 56 << 20
    if gen == 6:
        # v6e: 4 MiB tiles -> 24 MiB pipeline footprint, fits 32 MiB default.
        return 4 << 20, None
    # v5e / unknown: 2 MiB tiles -> 12 MiB footprint, fits 16 MiB default.
    return 2 << 20, None


def _pick_lanes(total: int) -> int:
    """Largest multiple-of-128 lane width dividing the flattened size (0 if none)."""
    for lanes in range(_MAX_LANES, _MIN_LANES - 1, -_MIN_LANES):
        if total % lanes == 0:
            return lanes
    return 0


def _fuse_add_kernel(rgb_ref, t_ref, o_ref):
    # Elementwise fusion of the two modality tensors (rgb + t).  Pure VPU work;
    # the kernel is HBM-bandwidth bound, so all perf comes from the pipeline.
    o_ref[...] = rgb_ref[...] + t_ref[...]


def fuse_rgb_t(rgb, t, *, force_pallas=False):
    """Demo Pallas elementwise fusion of rgb and t (same shape / dtype)."""
    assert rgb.shape == t.shape and rgb.dtype == t.dtype
    orig_shape = rgb.shape
    total = math.prod(orig_shape)
    itemsize = jnp.dtype(rgb.dtype).itemsize

    lanes = _pick_lanes(total)
    # Small tensors: dispatch + per-step overhead dwarfs the HBM traffic.
    # Non-128-divisible element counts take the plain path rather than padding.
    if (total < _SMALL_ELEMS_THRESHOLD and not force_pallas) or lanes == 0:
        return rgb + t

    rows = total // lanes
    rgb2 = rgb.reshape(rows, lanes)
    t2 = t.reshape(rows, lanes)

    sub = _sublane_multiple(rgb.dtype)
    target_bytes, vmem_limit = _tile_budget(rgb.dtype)

    # Constant block bytes regardless of lane width: rows per tile scale
    # inversely with lanes, rounded to the dtype's sublane packing.
    block_rows = target_bytes // (lanes * itemsize)
    block_rows = max(sub, (block_rows // sub) * sub)
    block_rows = min(block_rows, rows)
    if block_rows < rows:
        # Strict tile (not full extent): keep it sublane-aligned.
        block_rows = max(sub, (block_rows // sub) * sub)

    grid = (pl.cdiv(rows, block_rows),)

    compiler_kwargs = dict(
        # Independent tiles -> shard the grid across both TensorCores on v7x
        # (measured no-op on single-TC v5e/v6e, but free).
        dimension_semantics=("parallel",),
    )
    if vmem_limit is not None:
        compiler_kwargs["vmem_limit_bytes"] = vmem_limit

    out2 = pl.pallas_call(
        _fuse_add_kernel,
        out_shape=jax.ShapeDtypeStruct((rows, lanes), rgb.dtype),
        grid=grid,
        in_specs=[
            pl.BlockSpec((block_rows, lanes), lambda i: (i, 0)),
            pl.BlockSpec((block_rows, lanes), lambda i: (i, 0)),
        ],
        out_specs=pl.BlockSpec((block_rows, lanes), lambda i: (i, 0)),
        compiler_params=pltpu.CompilerParams(**compiler_kwargs),
        # Pure HBM traffic: 2 reads + 1 write; helps XLA schedule around it.
        cost_estimate=pl.CostEstimate(
            flops=total,
            transcendentals=0,
            bytes_accessed=3 * total * itemsize,
        ),
    )(rgb2, t2)

    return out2.reshape(orig_shape)


class LayerFusion2:
    """JAX port of layer_fusion_2. No parameters (reference init defines none)."""

    def __init__(self, ch, gd=1.0, gw=1.0):
        # Stored for parity with the constructor signature; the reference
        # module never registers them as parameters.
        self.ch = ch
        self.gd = gd
        self.gw = gw

    def gw_div(self, x):
        divisor = 8
        x *= self.gw
        return int(math.ceil(x / divisor) * divisor)

    def forward(self, rgb, t):
        # Exact reproduction of the PyTorch forward: bare `return` -> None.
        return


def layer_fusion_2_forward(rgb, t, ch=4, gd=1.0, gw=1.0):
    return LayerFusion2(ch, gd, gw).forward(rgb, t)


if __name__ == "__main__":
    key = jax.random.PRNGKey(0)
    k1, k2, k3, k4 = jax.random.split(key, 4)

    # Small NCHW inputs consistent with a fusion layer: batch=2, channels=4, 16x16.
    rgb = jax.random.normal(k1, (2, 4, 16, 16), dtype=jnp.float32)
    t = jax.random.normal(k2, (2, 4, 16, 16), dtype=jnp.float32)

    # Faithful forward (matches PyTorch semantics exactly: returns None).
    out = layer_fusion_2_forward(rgb, t)
    assert out is None

    # 1) Exercise the Pallas kernel on the small demo input (force past the
    #    small-size fallback so the TPU kernel path actually runs).
    fused_small = fuse_rgb_t(rgb, t, force_pallas=True)
    jax.block_until_ready(fused_small)
    assert jnp.allclose(fused_small, rgb + t, atol=1e-6), "small kernel mismatch"

    # 2) Larger input -> lane-dense 1024-wide flatten, multi-step tiled pipeline.
    rgb_big = jax.random.normal(k3, (4, 16, 128, 128), dtype=jnp.float32)
    t_big = jax.random.normal(k4, (4, 16, 128, 128), dtype=jnp.float32)
    fused_big = fuse_rgb_t(rgb_big, t_big)
    jax.block_until_ready(fused_big)
    assert jnp.allclose(fused_big, rgb_big + t_big, atol=1e-6), "tiled kernel mismatch"

    # 3) Size divisible by 768 but not 1024 -> exercises the widest-divisor
    #    lane pick (768 lanes) with constant-byte block_rows scaling.
    rgb_768 = jax.random.normal(k3, (2, 3, 16, 16), dtype=jnp.float32)
    t_768 = jax.random.normal(k4, (2, 3, 16, 16), dtype=jnp.float32)
    fused_768 = fuse_rgb_t(rgb_768, t_768, force_pallas=True)
    jax.block_until_ready(fused_768)
    assert jnp.allclose(fused_768, rgb_768 + t_768, atol=1e-6), "768-lane mismatch"

    # 4) bf16 input -> dtype-aware (16-row) sublane rounding path.
    rgb_bf = rgb_big.astype(jnp.bfloat16)
    t_bf = t_big.astype(jnp.bfloat16)
    fused_bf = fuse_rgb_t(rgb_bf, t_bf)
    jax.block_until_ready(fused_bf)
    assert jnp.allclose(
        fused_bf.astype(jnp.float32), (rgb_bf + t_bf).astype(jnp.float32)
    ), "bf16 kernel mismatch"

    # 5) Awkward element count (not a multiple of 128) -> plain-JAX fallback.
    rgb_odd = jax.random.normal(k1, (2, 3, 5, 7), dtype=jnp.float32)
    t_odd = jax.random.normal(k2, (2, 3, 5, 7), dtype=jnp.float32)
    fused_odd = fuse_rgb_t(rgb_odd, t_odd)
    jax.block_until_ready(fused_odd)
    assert jnp.allclose(fused_odd, rgb_odd + t_odd, atol=1e-6), "fallback mismatch"

    print("KERNEL_OK")
</pallas_src>

<mosaic_0001>
module attributes {stable_mosaic.version = 11 : i64} {
  func.func @_fuse_add_kernel(%arg0: i32, %arg1: memref<2x1024xf32, #tpu.memory_space<vmem>>, %arg2: memref<2x1024xf32, #tpu.memory_space<vmem>>, %arg3: memref<2x1024xf32, #tpu.memory_space<vmem>>) attributes {dimension_semantics = [#tpu.dimension_semantics<parallel>], iteration_bounds = array<i64: 1>, scalar_prefetch = 0 : i64, scratch_operands = 0 : i64, tpu.core_type = #tpu.core_type<tc>, window_params = [{transform_indices = @transform_0, window_bounds = array<i64: 2, 1024>}, {transform_indices = @transform_1, window_bounds = array<i64: 2, 1024>}, {transform_indices = @transform_2, window_bounds = array<i64: 2, 1024>}]} {
    %c0 = arith.constant 0 : index
    %c0_0 = arith.constant 0 : index
    %0 = vector.load %arg1[%c0, %c0_0] : memref<2x1024xf32, #tpu.memory_space<vmem>>, vector<2x1024xf32>
    %c0_1 = arith.constant 0 : index
    %c0_2 = arith.constant 0 : index
    %1 = vector.load %arg2[%c0_1, %c0_2] : memref<2x1024xf32, #tpu.memory_space<vmem>>, vector<2x1024xf32>
    %2 = arith.addf %0, %1 : vector<2x1024xf32>
    %c0_3 = arith.constant 0 : index
    %c0_4 = arith.constant 0 : index
    %3 = vector.load %arg3[%c0_3, %c0_4] : memref<2x1024xf32, #tpu.memory_space<vmem>>, vector<2x1024xf32>
    tpu.vector_store %arg3[%c0_3, %c0_4], %2 {strides = array<i32>} : memref<2x1024xf32, #tpu.memory_space<vmem>>, vector<2x1024xf32>,
    return
  }
  func.func @transform_0(%arg0: i32) -> (i32, i32) {
    %c0_i32 = arith.constant 0 : i32
    %c0_i32_0 = arith.constant 0 : i32
    return %arg0, %c0_i32 : i32, i32
  }
  func.func @transform_1(%arg0: i32) -> (i32, i32) {
    %c0_i32 = arith.constant 0 : i32
    %c0_i32_0 = arith.constant 0 : i32
    return %arg0, %c0_i32 : i32, i32
  }
  func.func @transform_2(%arg0: i32) -> (i32, i32) {
    %c0_i32 = arith.constant 0 : i32
    %c0_i32_0 = arith.constant 0 : i32
    return %arg0, %c0_i32 : i32, i32
  }
}

</mosaic_0001>

<llo_original>
// kernel: tpu_custom_call.1
$region0: #{tpu_custom_call.1}
  #allocation0 [shape = 'u32[]', space=smem, size = 0x4, offset = 0x4, fixed_abs, tag = 'smem constant byte address 0x4 - core index']
  #allocation1 [shape = 'u32[72,128]{1,0:T(1,128)}', space=vmem, size = 0x9000, scoped, tag = 'internal scratch']
  %s0 = inlined_call_operand.hbm [shape: f32[2,1024], index: 0, kind: input, shape index: {}]
  %s1 = inlined_call_operand.hbm [shape: f32[2,1024], index: 1, kind: input, shape index: {}]
  %s2 = inlined_call_operand.hbm [shape: f32[2,1024], index: 2, kind: output, shape index: {}]
  %s3 = sld [smem:[#allocation0]]
  $region26: #{tpu_custom_call.1} parent=0
    _
  %s5 = ssub.s32 1, %s3
  %s6 = scalar_select 0, %s5, %s3
  $region1: #{tpu_custom_call.1} parent=0
    #allocation2 [shape = 'u8[8192]{0}', space=vmem, size = 0x2000, scoped, tag = 'input window, operand 0, single buffered']
    #allocation3 [shape = 's32[1]{0}', space=sflag, size = 0x4, scoped, tag = 'scoped memory for tpu_custom_call.1']
    #allocation4 [shape = 's32[1]{0}', space=sflag, size = 0x4, scoped, tag = 'scoped memory for tpu_custom_call.1']
    #allocation5 [shape = 'u8[8192]{0}', space=vmem, size = 0x2000, scoped, tag = 'input window, operand 1, single buffered']
    #allocation6 [shape = 's32[1]{0}', space=sflag, size = 0x4, scoped, tag = 'scoped memory for tpu_custom_call.1']
    #allocation7 [shape = 'u8[8192]{0}', space=vmem, size = 0x2000, scoped, tag = 'output window, operand 0, single buffered']
    %7 = vsyncpa [#allocation3], 0
    %8 = vsyncpa [#allocation6], 0
    %9 = vsyncpa [#allocation4], 0
    // Predicated region
    $region2: #{tpu_custom_call.1} parent=1 // pred_check
      _
    $region3: #{tpu_custom_call.1} parent=1 // pred_check_branch
      %11 = sbr.rel (0) target = $region5
    $region4: #{tpu_custom_call.1} parent=1 // pred_region
      %13 = vsyncadd [#allocation3], 0
      %s15 = sshll.u32 %s0, 4
      %s16 = int_to_ptr.hbm [resolvable:$true] %s15
      %s17 = sshll.u32 [#allocation2], 4
      %s18 = int_to_ptr.vmem [resolvable:$true] %s17
      %20 = dma.hbm_to_vmem [thread:$0]  %s16, 256, %s18, [#allocation3]
    $region5: #{tpu_custom_call.1} parent=1 // pred_fallthru
      _
    // Predicated region
    $region6: #{tpu_custom_call.1} parent=1 // pred_check
      _
    $region7: #{tpu_custom_call.1} parent=1 // pred_check_branch
      %22 = sbr.rel (0) target = $region9
    $region8: #{tpu_custom_call.1} parent=1 // pred_region
      %24 = vsyncadd [#allocation6], 0
      %s26 = sshll.u32 %s1, 4
      %s27 = int_to_ptr.hbm [resolvable:$true] %s26
      %s28 = sshll.u32 [#allocation5], 4
      %s29 = int_to_ptr.vmem [resolvable:$true] %s28
      %31 = dma.hbm_to_vmem [thread:$0]  %s27, 256, %s29, [#allocation6]
    $region9: #{tpu_custom_call.1} parent=1 // pred_fallthru
      _
    // Predicated region
    $region10: #{tpu_custom_call.1} parent=1 // pred_check
      _
    $region11: #{tpu_custom_call.1} parent=1 // pred_check_branch
      %33 = sbr.rel (0) target = $region13
    $region12: #{tpu_custom_call.1} parent=1 // pred_region
      %35 = dma.done [#allocation3], 256
    $region13: #{tpu_custom_call.1} parent=1 // pred_fallthru
      _
    // Predicated region
    $region14: #{tpu_custom_call.1} parent=1 // pred_check
      _
    $region15: #{tpu_custom_call.1} parent=1 // pred_check_branch
      %37 = sbr.rel (0) target = $region17
    $region16: #{tpu_custom_call.1} parent=1 // pred_region
      %39 = dma.done [#allocation6], 256
    $region17: #{tpu_custom_call.1} parent=1 // pred_fallthru
      _
    %v40 = vld [vmem:[#allocation2] sm:$0xff]
    %v41 = vld [vmem:[#allocation2 + $0x8] sm:$0xff]
    %v42 = vld [vmem:[#allocation5] sm:$0xff]
    %v43 = vld [vmem:[#allocation5 + $0x8] sm:$0xff]
    %v44 = vadd.f32 %v40, %v42
    %v45 = vadd.f32 %v41, %v43
    %46 = vst [vmem:[#allocation7] sm:$0xff] %v44
    %47 = vst [vmem:[#allocation7 + $0x8] sm:$0xff] %v45
    // Predicated region
    $region18: #{tpu_custom_call.1} parent=1 // pred_check
      _
    $region19: #{tpu_custom_call.1} parent=1 // pred_check_branch
      %49 = sbr.rel (0) target = $region21
    $region20: #{tpu_custom_call.1} parent=1 // pred_region
      %51 = vsyncadd [#allocation4], 0
      %s53 = sshll.u32 [#allocation7], 4
      %s54 = int_to_ptr.vmem [resolvable:$true] %s53
      %s55 = sshll.u32 %s2, 4
      %s56 = int_to_ptr.hbm [resolvable:$true] %s55
      %58 = dma.vmem_to_hbm [thread:$0]  %s54, 256, %s56, [#allocation4]
    $region21: #{tpu_custom_call.1} parent=1 // pred_fallthru
      _
    // Predicated region
    $region22: #{tpu_custom_call.1} parent=1 // pred_check
      _
    $region23: #{tpu_custom_call.1} parent=1 // pred_check_branch
      %60 = sbr.rel (0) target = $region25
    $region24: #{tpu_custom_call.1} parent=1 // pred_region
      %62 = dma.done [#allocation4], 256
    $region25: #{tpu_custom_call.1} parent=1 // pred_fallthru
      _
    %63 = vsyncpa [#allocation3], 1
    %64 = vsyncpa [#allocation6], 1
    %65 = vsyncpa [#allocation4], 1

</llo_original>
